<compile_context>
chip_gen: v5e
topology: v5e:2x2
jax: 0.10.0
libtpu: 0.0.40
codegen_flags: <defaults>
</compile_context>

<pallas_src>
import functools

import jax
import jax.numpy as jnp
from jax.experimental import pallas as pl
from jax.experimental.pallas import tpu as pltpu

LANE = 128
SUBLANE = 8


def _round_up(x, m):
    return ((x + m - 1) // m) * m


def _cdiv(a, b):
    return (a + b - 1) // b


def slp_kernel(x_ref, w1_ref, b1_ref, w2_ref, b2_ref, o_ref, *, d_out, use_bf16):
    dot_dtype = jnp.bfloat16 if use_bf16 else jnp.float32
    # hidden = relu(x @ W1 + b1)  -- operands lane-dense (H padded to 128),
    # f32 accumulation + f32 epilogue.
    h = jnp.maximum(
        jnp.dot(
            x_ref[...].astype(dot_dtype),
            w1_ref[...].astype(dot_dtype),
            preferred_element_type=jnp.float32,
        )
        + b1_ref[...],
        0.0,
    )
    # out = h @ W2 + b2  -- W2/b2 lane-padded MXU/VPU operands; only the real
    # D_out columns are stored (out block is (bm, D_out)), so HBM writeback is
    # 16 B/row instead of 512 B/row.
    out_full = (
        jnp.dot(
            h.astype(dot_dtype),
            w2_ref[...].astype(dot_dtype),
            preferred_element_type=jnp.float32,
        )
        + b2_ref[...]
    )
    o_ref[...] = out_full[:, :d_out]


def pad_params(w1, b1, w2, b2):
    """Zero-pad H and D_out to the 128-lane width (exact; call once, outside jit).

    w1: (D_in, H); b1: (1, H); w2: (H, D_out); b2: (1, D_out) -- already stored
    transposed as (fan_in, fan_out) so the kernel computes plain x @ W.
    """
    D_in, H = w1.shape
    D_out = w2.shape[1]
    Hp = _round_up(H, LANE)
    Dp = _round_up(D_out, LANE)
    w1p = jnp.zeros((D_in, Hp), jnp.float32).at[:, :H].set(w1)
    b1p = jnp.zeros((1, Hp), jnp.float32).at[:, :H].set(b1)
    w2p = jnp.zeros((Hp, Dp), jnp.float32).at[:H, :D_out].set(w2)
    b2p = jnp.zeros((1, Dp), jnp.float32).at[:, :D_out].set(b2)
    return w1p, b1p, w2p, b2p


def slp_forward(x, w1p, b1p, w2p, b2p, *, d_out, block_b=4096, use_bf16=True):
    """x: (B, D_in) f32.  Padded params from pad_params().  Returns (B, d_out) f32."""
    x = x.astype(jnp.float32)
    B, D_in = x.shape
    Hp = w1p.shape[1]
    Dp = w2p.shape[1]

    # --- batch tiling -------------------------------------------------------
    # Pad B only to the sublane multiple, then pick bm so the grid keeps >= 4
    # steps (pipelining + 2-TC sharding on v7x), capped at block_b rows.
    B8 = _round_up(B, SUBLANE)
    bm = min(block_b, max(SUBLANE, _round_up(_cdiv(B8, 4), SUBLANE)))
    Bp = _round_up(B8, bm)
    xp = x if Bp == B else jnp.zeros((Bp, D_in), jnp.float32).at[:B, :].set(x)
    grid = (Bp // bm,)

    flops = 2 * Bp * D_in * Hp + 2 * Bp * Hp * Dp
    bytes_accessed = 4 * (
        Bp * D_in + D_in * Hp + Hp + Hp * Dp + Dp + Bp * d_out
    )

    kernel = functools.partial(slp_kernel, d_out=d_out, use_bf16=use_bf16)

    out = pl.pallas_call(
        kernel,
        out_shape=jax.ShapeDtypeStruct((Bp, d_out), jnp.float32),
        grid=grid,
        in_specs=[
            pl.BlockSpec((bm, D_in), lambda i: (i, 0)),   # x: tiled over batch
            pl.BlockSpec((D_in, Hp), lambda i: (0, 0)),   # W1: VMEM-resident
            pl.BlockSpec((1, Hp), lambda i: (0, 0)),      # b1: VMEM-resident
            pl.BlockSpec((Hp, Dp), lambda i: (0, 0)),     # W2: VMEM-resident
            pl.BlockSpec((1, Dp), lambda i: (0, 0)),      # b2: VMEM-resident
        ],
        # Last block dim equals the full array dim (d_out) -> legal, and only
        # the real output bytes hit HBM.
        out_specs=pl.BlockSpec((bm, d_out), lambda i: (i, 0)),
        compiler_params=pltpu.CompilerParams(
            dimension_semantics=("parallel",),     # batch axis: 2-TC shard on v7x
            vmem_limit_bytes=32 * 1024 * 1024,     # ample; footprint <1 MiB here
        ),
        cost_estimate=pl.CostEstimate(
            flops=flops, transcendentals=0, bytes_accessed=bytes_accessed
        ),
    )(xp, w1p, b1p, w2p, b2p)

    # padded batch rows (if any) sliced back off; feature axis already exact
    return out[:B]


def init_params(key, d_in, hidden, d_out):
    """Deterministic init mimicking torch.nn.Linear default U(-1/sqrt(fan_in), +)."""
    k1, k2, k3, k4 = jax.random.split(key, 4)
    bound1 = 1.0 / jnp.sqrt(d_in)
    bound2 = 1.0 / jnp.sqrt(hidden)
    # stored already transposed: (fan_in, fan_out)
    w1 = jax.random.uniform(k1, (d_in, hidden), jnp.float32, -bound1, bound1)
    b1 = jax.random.uniform(k2, (1, hidden), jnp.float32, -bound1, bound1)
    w2 = jax.random.uniform(k3, (hidden, d_out), jnp.float32, -bound2, bound2)
    b2 = jax.random.uniform(k4, (1, d_out), jnp.float32, -bound2, bound2)
    return w1, b1, w2, b2


def _reference(x, w1, b1, w2, b2):
    return jnp.maximum(x @ w1 + b1, 0.0) @ w2 + b2


if __name__ == "__main__":
    # SLP(input_shape=(8,), output_shape=4): D_in=8, hidden=40, D_out=4
    D_IN, HIDDEN, D_OUT = 8, 40, 4

    key = jax.random.PRNGKey(0)
    kx, kp, kx2 = jax.random.split(key, 3)
    w1, b1, w2, b2 = init_params(kp, D_IN, HIDDEN, D_OUT)
    # Padding hoisted out of the per-call path (weights are static).
    w1p, b1p, w2p, b2p = pad_params(w1, b1, w2, b2)

    fwd_f32 = jax.jit(functools.partial(slp_forward, d_out=D_OUT, use_bf16=False))
    fwd_bf16 = jax.jit(functools.partial(slp_forward, d_out=D_OUT, use_bf16=True))

    # --- small-batch case (matches the original module's usage) -----------
    B = 2
    x = jax.random.normal(kx, (B, D_IN), jnp.float32)
    ref = _reference(x, w1, b1, w2, b2)

    out_f32 = fwd_f32(x, w1p, b1p, w2p, b2p)
    jax.block_until_ready(out_f32)
    assert out_f32.shape == (B, D_OUT)
    assert jnp.allclose(out_f32, ref, atol=1e-5, rtol=1e-5)

    out_bf16 = fwd_bf16(x, w1p, b1p, w2p, b2p)
    jax.block_until_ready(out_bf16)
    assert out_bf16.shape == (B, D_OUT)
    assert jnp.allclose(out_bf16, ref, atol=2e-2, rtol=2e-2)

    # --- larger batch: exercises the batch grid (4 tiles of 256 rows) -----
    B2 = 1024
    x2 = jax.random.normal(kx2, (B2, D_IN), jnp.float32)
    ref2 = _reference(x2, w1, b1, w2, b2)
    out2 = fwd_bf16(x2, w1p, b1p, w2p, b2p)
    jax.block_until_ready(out2)
    assert out2.shape == (B2, D_OUT)
    assert jnp.allclose(out2, ref2, atol=2e-2, rtol=2e-2)

    print("KERNEL_OK")
</pallas_src>

<mosaic_0001>
module attributes {stable_mosaic.version = 11 : i64} {
  func.func @slp_kernel(%arg0: i32, %arg1: memref<8x8xf32, #tpu.memory_space<vmem>>, %arg2: memref<8x128xf32, #tpu.memory_space<vmem>>, %arg3: memref<1x128xf32, #tpu.memory_space<vmem>>, %arg4: memref<128x128xf32, #tpu.memory_space<vmem>>, %arg5: memref<1x128xf32, #tpu.memory_space<vmem>>, %arg6: memref<8x4xf32, #tpu.memory_space<vmem>>) attributes {dimension_semantics = [#tpu.dimension_semantics<parallel>], iteration_bounds = array<i64: 1>, scalar_prefetch = 0 : i64, scratch_operands = 0 : i64, tpu.core_type = #tpu.core_type<tc>, window_params = [{transform_indices = @transform_0, window_bounds = array<i64: 8, 8>}, {pipeline_mode = #tpu.pipeline_mode<synchronous>, transform_indices = @transform_1, window_bounds = array<i64: 8, 128>}, {pipeline_mode = #tpu.pipeline_mode<synchronous>, transform_indices = @transform_2, window_bounds = array<i64: 1, 128>}, {pipeline_mode = #tpu.pipeline_mode<synchronous>, transform_indices = @transform_3, window_bounds = array<i64: 128, 128>}, {pipeline_mode = #tpu.pipeline_mode<synchronous>, transform_indices = @transform_4, window_bounds = array<i64: 1, 128>}, {transform_indices = @transform_5, window_bounds = array<i64: 8, 4>}]} {
    %c0 = arith.constant 0 : index
    %c0_0 = arith.constant 0 : index
    %0 = vector.load %arg1[%c0, %c0_0] : memref<8x8xf32, #tpu.memory_space<vmem>>, vector<8x8xf32>
    %c0_1 = arith.constant 0 : index
    %c0_2 = arith.constant 0 : index
    %1 = vector.load %arg2[%c0_1, %c0_2] : memref<8x128xf32, #tpu.memory_space<vmem>>, vector<8x128xf32>
    %cst = arith.constant dense<0.000000e+00> : vector<8x128xf32>
    %2 = tpu.matmul %0, %1, %cst {dimension_numbers = #tpu.dot_dimension_numbers<[1], [0], [0], [1], [0, 0, 1, 1], [], []>} : vector<8x8xf32>, vector<8x128xf32>, vector<8x128xf32> -> vector<8x128xf32>
    %c0_3 = arith.constant 0 : index
    %c0_4 = arith.constant 0 : index
    %3 = vector.load %arg3[%c0_3, %c0_4] : memref<1x128xf32, #tpu.memory_space<vmem>>, vector<1x128xf32>
    %4 = vector.broadcast %3 : vector<1x128xf32> to vector<8x128xf32>
    %5 = arith.addf %2, %4 : vector<8x128xf32>
    %cst_5 = arith.constant 0.000000e+00 : f32
    %6 = vector.broadcast %cst_5 : f32 to vector<8x128xf32>
    %7 = arith.maximumf %5, %6 : vector<8x128xf32>
    %c0_6 = arith.constant 0 : index
    %c0_7 = arith.constant 0 : index
    %8 = vector.load %arg4[%c0_6, %c0_7] : memref<128x128xf32, #tpu.memory_space<vmem>>, vector<128x128xf32>
    %cst_8 = arith.constant dense<0.000000e+00> : vector<8x128xf32>
    %9 = tpu.matmul %7, %8, %cst_8 {dimension_numbers = #tpu.dot_dimension_numbers<[1], [0], [0], [1], [0, 0, 1, 1], [], []>} : vector<8x128xf32>, vector<128x128xf32>, vector<8x128xf32> -> vector<8x128xf32>
    %c0_9 = arith.constant 0 : index
    %c0_10 = arith.constant 0 : index
    %10 = vector.load %arg5[%c0_9, %c0_10] : memref<1x128xf32, #tpu.memory_space<vmem>>, vector<1x128xf32>
    %11 = vector.broadcast %10 : vector<1x128xf32> to vector<8x128xf32>
    %12 = arith.addf %9, %11 : vector<8x128xf32>
    %13 = vector.extract_strided_slice %12 {offsets = [0, 0], sizes = [8, 4], strides = [1, 1]} : vector<8x128xf32> to vector<8x4xf32>
    %c0_11 = arith.constant 0 : index
    %c0_12 = arith.constant 0 : index
    %14 = vector.load %arg6[%c0_11, %c0_12] : memref<8x4xf32, #tpu.memory_space<vmem>>, vector<8x4xf32>
    tpu.vector_store %arg6[%c0_11, %c0_12], %13 {strides = array<i32>} : memref<8x4xf32, #tpu.memory_space<vmem>>, vector<8x4xf32>,
    return
  }
  func.func @transform_0(%arg0: i32) -> (i32, i32) {
    %c0_i32 = arith.constant 0 : i32
    %c0_i32_0 = arith.constant 0 : i32
    return %arg0, %c0_i32 : i32, i32
  }
  func.func @transform_1(%arg0: i32) -> (i32, i32) {
    %c0_i32 = arith.constant 0 : i32
    %c0_i32_0 = arith.constant 0 : i32
    %c0_i32_1 = arith.constant 0 : i32
    return %c0_i32, %c0_i32_0 : i32, i32
  }
  func.func @transform_2(%arg0: i32) -> (i32, i32) {
    %c0_i32 = arith.constant 0 : i32
    %c0_i32_0 = arith.constant 0 : i32
    %c0_i32_1 = arith.constant 0 : i32
    return %c0_i32, %c0_i32_0 : i32, i32
  }
  func.func @transform_3(%arg0: i32) -> (i32, i32) {
    %c0_i32 = arith.constant 0 : i32
    %c0_i32_0 = arith.constant 0 : i32
    %c0_i32_1 = arith.constant 0 : i32
    return %c0_i32, %c0_i32_0 : i32, i32
  }
  func.func @transform_4(%arg0: i32) -> (i32, i32) {
    %c0_i32 = arith.constant 0 : i32
    %c0_i32_0 = arith.constant 0 : i32
    %c0_i32_1 = arith.constant 0 : i32
    return %c0_i32, %c0_i32_0 : i32, i32
  }
  func.func @transform_5(%arg0: i32) -> (i32, i32) {
    %c0_i32 = arith.constant 0 : i32
    %c0_i32_0 = arith.constant 0 : i32
    return %arg0, %c0_i32 : i32, i32
  }
}

</mosaic_0001>

<llo_original>
// kernel: slp_forward.1
$region0: #{slp_forward.1}
  #allocation0 [shape = 'u32[]', space=smem, size = 0x4, offset = 0x4, fixed_abs, tag = 'smem constant byte address 0x4 - core index']
  #allocation1 [shape = 'u32[72,128]{1,0:T(1,128)}', space=vmem, size = 0x9000, scoped, tag = 'internal scratch']
  %s0 = inlined_call_operand.vmem [shape: f32[8,8], index: 0, kind: input, shape index: {}]
  %s1 = inlined_call_operand.vmem [shape: f32[8,128], index: 1, kind: input, shape index: {}]
  %s2 = inlined_call_operand.vmem [shape: f32[1,128], index: 2, kind: input, shape index: {}]
  %s3 = inlined_call_operand.hbm [shape: f32[128,128], index: 3, kind: input, shape index: {}]
  %s4 = inlined_call_operand.vmem [shape: f32[1,128], index: 4, kind: input, shape index: {}]
  %s5 = inlined_call_operand.vmem [shape: f32[8,4], index: 5, kind: output, shape index: {}]
  %s6 = sld [smem:[#allocation0]]
  $region34: #{slp_forward.1} parent=0
    _
  %s8 = ssub.s32 1, %s6
  %s9 = scalar_select 0, %s8, %s6
  $region1: #{slp_forward.1} parent=0
    #allocation2 [shape = 'u8[65536]{0}', space=vmem, size = 0x10000, scoped, tag = 'input window, operand 3, single buffered']
    #allocation3 [shape = 's32[1]{0}', space=sflag, size = 0x4, scoped, tag = 'scoped memory for slp_forward.1']
    %10 = vsyncpa [#allocation3], 0
    // Predicated region
    $region2: #{slp_forward.1} parent=1 // pred_check
      _
    $region3: #{slp_forward.1} parent=1 // pred_check_branch
      %12 = sbr.rel (0) target = $region5
    $region4: #{slp_forward.1} parent=1 // pred_region
      _
    $region5: #{slp_forward.1} parent=1 // pred_fallthru
      _
    // Predicated region
    $region6: #{slp_forward.1} parent=1 // pred_check
      _
    $region7: #{slp_forward.1} parent=1 // pred_check_branch
      %14 = sbr.rel (0) target = $region9
    $region8: #{slp_forward.1} parent=1 // pred_region
      _
    $region9: #{slp_forward.1} parent=1 // pred_fallthru
      _
    // Predicated region
    $region10: #{slp_forward.1} parent=1 // pred_check
      _
    $region11: #{slp_forward.1} parent=1 // pred_check_branch
      %16 = sbr.rel (0) target = $region13
    $region12: #{slp_forward.1} parent=1 // pred_region
      _
    $region13: #{slp_forward.1} parent=1 // pred_fallthru
      _
    // Predicated region
    $region14: #{slp_forward.1} parent=1 // pred_check
      _
    $region15: #{slp_forward.1} parent=1 // pred_check_branch
      %18 = sbr.rel (0) target = $region17
    $region16: #{slp_forward.1} parent=1 // pred_region
      %20 = vsyncadd [#allocation3], 0
      %s21 = sshll.u32 %s3, 4
      %s22 = int_to_ptr.hbm [resolvable:$true] %s21
      %s23 = sshll.u32 [#allocation2], 4
      %s24 = int_to_ptr.vmem [resolvable:$true] %s23
      %29 = dma.hbm_to_vmem [thread:$0]  %s22, 2048, %s24, [#allocation3], 128, 128, 8
    $region17: #{slp_forward.1} parent=1 // pred_fallthru
      _
    // Predicated region
    $region18: #{slp_forward.1} parent=1 // pred_check
      _
    $region19: #{slp_forward.1} parent=1 // pred_check_branch
      %31 = sbr.rel (0) target = $region21
    $region20: #{slp_forward.1} parent=1 // pred_region
      _
    $region21: #{slp_forward.1} parent=1 // pred_fallthru
      _
    // Predicated region
    $region22: #{slp_forward.1} parent=1 // pred_check
      _
    $region23: #{slp_forward.1} parent=1 // pred_check_branch
      %33 = sbr.rel (0) target = $region25
    $region24: #{slp_forward.1} parent=1 // pred_region
      %35 = dma.done [#allocation3], 2048
    $region25: #{slp_forward.1} parent=1 // pred_fallthru
      _
    %v36 = vld [vmem:[%s0] sm:$0xff]
    %v37 = vld [vmem:[%s1] sm:$0xff]
    %v38 = vld [vmem:[%s2] sm:$0x1]
    %v40 = vperm.slane %v38, 0
    %vm42 = vcmask 64512
    %v44 = vsel %vm42, %v36, 0
    %46 = vmatpush.msra.mxu0 0.0
    %47 = vmatpush.msra.mxu0 0.0
    %48 = vmatpush.msra.mxu0 0.0
    %49 = vmatpush.msra.mxu0 0.0
    %50 = vmatpush.msra.mxu0 0.0
    %51 = vmatpush.msra.mxu0 0.0
    %52 = vmatpush.msra.mxu0 0.0
    %53 = vmatpush.msra.mxu0 0.0
    %54 = vmatpush.msra.mxu0 0.0
    %55 = vmatpush.msra.mxu0 0.0
    %56 = vmatpush.msra.mxu0 0.0
    %57 = vmatpush.msra.mxu0 0.0
    %58 = vmatpush.msra.mxu0 0.0
    %59 = vmatpush.msra.mxu0 0.0
    %60 = vmatpush.msra.mxu0 0.0
    %61 = vmatpush.msra.mxu0 %v37
    %62 = vmatmul.f32.gmra.mxu0 %v44
    %v63 = vpop.f32.mrf.mxu0
    %v64 = vadd.f32 %v40, %v63
    %65 = vdwg.mxu0
    %v66 = vmax.f32 %v64, 0.0
    %v67 = vld [vmem:[#allocation2] sm:$0xff]
    %v68 = vld [vmem:[#allocation2 + $0x8] sm:$0xff]
    %v69 = vld [vmem:[#allocation2 + $0x10] sm:$0xff]
    %v70 = vld [vmem:[#allocation2 + $0x18] sm:$0xff]
    %v71 = vld [vmem:[#allocation2 + $0x20] sm:$0xff]
    %v72 = vld [vmem:[#allocation2 + $0x28] sm:$0xff]
    %v73 = vld [vmem:[#allocation2 + $0x30] sm:$0xff]
    %v74 = vld [vmem:[#allocation2 + $0x38] sm:$0xff]
    %v75 = vld [vmem:[#allocation2 + $0x40] sm:$0xff]
    %v76 = vld [vmem:[#allocation2 + $0x48] sm:$0xff]
    %v77 = vld [vmem:[#allocation2 + $0x50] sm:$0xff]
    %v78 = vld [vmem:[#allocation2 + $0x58] sm:$0xff]
    %v79 = vld [vmem:[#allocation2 + $0x60] sm:$0xff]
    %v80 = vld [vmem:[#allocation2 + $0x68] sm:$0xff]
    %v81 = vld [vmem:[#allocation2 + $0x70] sm:$0xff]
    %v82 = vld [vmem:[#allocation2 + $0x78] sm:$0xff]
    %v83 = vld [vmem:[%s4] sm:$0x1]
    %v85 = vperm.slane %v83, 0
    %87 = vmatpush.msra.mxu0 %v82
    %88 = vmatpush.msra.mxu0 %v81
    %89 = vmatpush.msra.mxu0 %v80
    %90 = vmatpush.msra.mxu0 %v79
    %91 = vmatpush.msra.mxu0 %v78
    %92 = vmatpush.msra.mxu0 %v77
    %93 = vmatpush.msra.mxu0 %v76
    %94 = vmatpush.msra.mxu0 %v75
    %95 = vmatpush.msra.mxu0 %v74
    %96 = vmatpush.msra.mxu0 %v73
    %97 = vmatpush.msra.mxu0 %v72
    %98 = vmatpush.msra.mxu0 %v71
    %99 = vmatpush.msra.mxu0 %v70
    %100 = vmatpush.msra.mxu0 %v69
    %101 = vmatpush.msra.mxu0 %v68
    %102 = vmatpush.msra.mxu0 %v67
    %103 = vmatmul.f32.gmra.mxu0 %v66
    %v104 = vpop.f32.mrf.mxu0
    %v105 = vadd.f32 %v85, %v104
    %106 = vdwg.mxu0
    %vm107 = vcmask 31744
    %108 = vst.msk [vmem:[%s5] sm:$0xff] %vm107, %v105
    // Predicated region
    $region26: #{slp_forward.1} parent=1 // pred_check
      _
    $region27: #{slp_forward.1} parent=1 // pred_check_branch
      %110 = sbr.rel (0) target = $region29
    $region28: #{slp_forward.1} parent=1 // pred_region
      _
    $region29: #{slp_forward.1} parent=1 // pred_fallthru
      _
    // Predicated region
    $region30: #{slp_forward.1} parent=1 // pred_check
      _
    $region31: #{slp_forward.1} parent=1 // pred_check_branch
      %112 = sbr.rel (0) target = $region33
    $region32: #{slp_forward.1} parent=1 // pred_region
      _
    $region33: #{slp_forward.1} parent=1 // pred_fallthru
      _
    %113 = vsyncpa [#allocation3], 1

</llo_original>
